<compile_context>
chip_gen: v5e
topology: v5e:2x2
jax: 0.10.0
libtpu: 0.0.40
codegen_flags: <defaults>
</compile_context>

<pallas_src>
import jax
import jax.numpy as jnp
from jax.experimental import pallas as pl
from jax.experimental.pallas import tpu as pltpu

_HIGHEST = jax.lax.Precision.HIGHEST


# --------------------------------------------------------------------------- #
# Kernels
# --------------------------------------------------------------------------- #
def _attn_weights_kernel(x_ref, label_t_ref, a_ref):
    # a = softmax(tanh(x @ label.T)) for one (tn, D) row-tile of x.
    m = jax.lax.dot_general(
        x_ref[...], label_t_ref[...],
        dimension_numbers=(((1,), (0,)), ((), ())),
        preferred_element_type=jnp.float32,
        precision=_HIGHEST)                                   # (tn, C), MXU
    m = jnp.tanh(m)                                           # EUP
    exps = jnp.exp(m)                                         # EUP
    denom = jnp.sum(exps, axis=1, keepdims=True)              # XLU row reduce
    # Exact divide: tanh bounds m to [-1, 1] so denom is in [C/e, C*e]; the
    # approximate reciprocal is not worth the accuracy loss on this tiny tile.
    a_ref[...] = (exps / denom).astype(a_ref.dtype)
    # NOTE: rows of a partial last tile are computed from padding garbage and
    # masked out on writeback; keep this kernel strictly row-local (no
    # reductions across the N axis).


def _final_mix_kernel(a_rs_ref, label_ref, out_ref):
    # out = a_rs.T @ label  ( == (label.T @ a_rs).T ) for one column-tile of a_rs.
    out = jax.lax.dot_general(
        a_rs_ref[...], label_ref[...],
        dimension_numbers=(((0,), (0,)), ((), ())),
        preferred_element_type=jnp.float32,
        precision=_HIGHEST)                                   # (tn, D), MXU
    out_ref[...] = out.astype(out_ref.dtype)


# --------------------------------------------------------------------------- #
# Tiling helpers (generation-aware)
# --------------------------------------------------------------------------- #
def _vmem_budget_bytes():
    """VMEM budget with headroom: ~48 MiB on v7x (64 MiB phys), ~96 MiB on v5e/v6e."""
    try:
        cap = pltpu.get_tpu_info().vmem_capacity_bytes
    except Exception:
        cap = 64 * 1024 * 1024          # conservative fallback (v7x-sized)
    return min(int(cap) * 3 // 4, 96 * 1024 * 1024)


def _choose_tile_n(N, D, C, itemsize, vmem_budget, target=2048):
    """Largest multiple-of-256 row tile whose double-buffered working set fits."""
    # Worst per-step working set of either kernel (default double buffering):
    #   2*tn*D*itemsize   x tile (kernel 1) / out tile (kernel 2)
    #   2*tn*C*4          a / a_rs tile (f32)
    #   2*C*D*4           resident label (constant index_map)
    fixed = 2 * C * D * 4 + (4 << 20)         # + headroom for internal scratch
    per_row = 2 * (D * itemsize + C * 4)
    cap = (vmem_budget - fixed) // per_row
    tn = max(256, (min(int(target), int(cap)) // 256) * 256)
    if N <= tn:
        return N                               # single full-extent block
    # Keep an even number of grid steps so both v7x TensorCores stay busy.
    steps = pl.cdiv(N, tn)
    if steps % 2:
        steps += 1
        tn = max(256, ((pl.cdiv(N, steps) + 255) // 256) * 256)
    return tn


# --------------------------------------------------------------------------- #
# Forward wrapper
# --------------------------------------------------------------------------- #
def sen_attention_label_forward(x, label, num_class):
    """x: (N, D), label: (C, D) with C == num_class. Returns (N, D) in x.dtype."""
    N, D = x.shape
    C, D2 = label.shape
    assert C == num_class and D2 == D

    itemsize = jnp.dtype(x.dtype).itemsize
    budget = _vmem_budget_bytes()
    tn = _choose_tile_n(N, D, C, itemsize, budget)
    grid = (pl.cdiv(N, tn),)
    cparams = pltpu.CompilerParams(
        dimension_semantics=("parallel",),
        vmem_limit_bytes=budget,
    )

    # label.T computed once in the wrapper (tiny) so kernel 1 gets a canonical
    # (tn, D) x (D, C) MXU feed instead of re-transposing the resident block
    # on every grid step.
    label_t = label.T                                        # (D, C)

    # ---- kernel 1: attention weights `a`, streamed over N -------------------
    a = pl.pallas_call(
        _attn_weights_kernel,
        out_shape=jax.ShapeDtypeStruct((N, C), jnp.float32),
        grid=grid,
        in_specs=[
            pl.BlockSpec((tn, D), lambda i: (i, 0)),         # stream x tiles
            pl.BlockSpec((D, C), lambda i: (0, 0)),          # label.T resident
        ],
        out_specs=pl.BlockSpec((tn, C), lambda i: (i, 0)),
        compiler_params=cparams,
        cost_estimate=pl.CostEstimate(
            flops=2 * N * D * C,
            transcendentals=2 * N * C,
            bytes_accessed=itemsize * (N * D + C * D) + 4 * N * C),
    )(x, label_t)

    # RAW row-major reshape (N, C) -> (C, N), matching
    # torch.Tensor.reshape(a, [C, -1]).  Intentionally NOT a transpose; it is
    # an element scramble that BlockSpecs cannot express, so it stays in XLA
    # (traffic is only N*C*4 bytes).
    a_rs = a.reshape(C, N)

    # ---- kernel 2: finalx = a_rs.T @ label, streamed over N ------------------
    out = pl.pallas_call(
        _final_mix_kernel,
        out_shape=jax.ShapeDtypeStruct((N, D), x.dtype),
        grid=grid,
        in_specs=[
            pl.BlockSpec((C, tn), lambda i: (0, i)),         # lane-dense a_rs tiles
            pl.BlockSpec((C, D), lambda i: (0, 0)),          # label resident
        ],
        out_specs=pl.BlockSpec((tn, D), lambda i: (i, 0)),   # lane-dense output
        compiler_params=cparams,
        cost_estimate=pl.CostEstimate(
            flops=2 * N * C * D,
            transcendentals=0,
            bytes_accessed=4 * N * C + itemsize * (C * D + N * D)),
    )(a_rs, label)
    return out


# --------------------------------------------------------------------------- #
# Reference & tests
# --------------------------------------------------------------------------- #
def _reference(x, label, num_class):
    # Pure-JAX mirror of the PyTorch forward.  Precision.HIGHEST keeps the f32
    # matmuls at full f32 accuracy: XLA's TPU default would round operands to
    # bf16 and diverge from the f32-accurate Pallas MXU path near tanh's
    # linear region (that is what broke the previous 5e-3 check).
    label_t = label.T                                                 # (D, C)
    m = jnp.tanh(jnp.dot(x, label_t, precision=_HIGHEST))             # (N, C)
    exps = jnp.exp(m)
    a = exps / jnp.sum(exps, axis=1).reshape(-1, 1)                   # (N, C)
    a_rs = a.reshape(num_class, -1)                                   # (C, N) raw reshape
    finalx = jnp.dot(label_t, a_rs, precision=_HIGHEST)               # (D, N)
    return finalx.T                                                   # (N, D)


def _check(N, D, C, key, atol=3e-3, rtol=3e-3):
    kx, kl = jax.random.split(key)
    x = jax.random.normal(kx, (N, D), dtype=jnp.float32)
    label = jax.random.normal(kl, (C, D), dtype=jnp.float32)

    out = sen_attention_label_forward(x, label, num_class=C)
    out = jax.block_until_ready(out)
    ref = _reference(x, label, C)

    assert out.shape == (N, D)
    assert bool(jnp.allclose(out, ref, atol=atol, rtol=rtol)), (
        f"mismatch vs reference at N={N}, D={D}, C={C}: "
        f"max|diff|={float(jnp.max(jnp.abs(out - ref))):.3e}")


if __name__ == "__main__":
    key = jax.random.PRNGKey(0)
    k1, k2 = jax.random.split(key)

    # Small deterministic demo shapes implied by the module (N sentences,
    # hidden D, num_class C): single full-extent block.
    _check(N=8, D=32, C=4, key=k1)

    # Larger shape exercising the tiled / pipelined path, including a partial
    # last N tile (2500 = 2048 + 452).  Both kernels are strictly row-local so
    # edge-block padding never contaminates valid rows.
    _check(N=2500, D=256, C=4, key=k2)

    print("KERNEL_OK")
</pallas_src>

<mosaic_0001>
module attributes {stable_mosaic.version = 11 : i64} {
  func.func @_attn_weights_kernel(%arg0: i32, %arg1: memref<8x32xf32, #tpu.memory_space<vmem>>, %arg2: memref<32x4xf32, #tpu.memory_space<vmem>>, %arg3: memref<8x4xf32, #tpu.memory_space<vmem>>) attributes {dimension_semantics = [#tpu.dimension_semantics<parallel>], iteration_bounds = array<i64: 1>, scalar_prefetch = 0 : i64, scratch_operands = 0 : i64, tpu.core_type = #tpu.core_type<tc>, window_params = [{transform_indices = @transform_0, window_bounds = array<i64: 8, 32>}, {pipeline_mode = #tpu.pipeline_mode<synchronous>, transform_indices = @transform_1, window_bounds = array<i64: 32, 4>}, {transform_indices = @transform_2, window_bounds = array<i64: 8, 4>}]} {
    %c0 = arith.constant 0 : index
    %c0_0 = arith.constant 0 : index
    %0 = vector.load %arg1[%c0, %c0_0] : memref<8x32xf32, #tpu.memory_space<vmem>>, vector<8x32xf32>
    %c0_1 = arith.constant 0 : index
    %c0_2 = arith.constant 0 : index
    %1 = vector.load %arg2[%c0_1, %c0_2] : memref<32x4xf32, #tpu.memory_space<vmem>>, vector<32x4xf32>
    %cst = arith.constant dense<0.000000e+00> : vector<8x4xf32>
    %2 = tpu.matmul %0, %1, %cst {dimension_numbers = #tpu.dot_dimension_numbers<[1], [0], [0], [1], [0, 0, 1, 1], [], []>, precision = #tpu.contract_precision<fp32>} : vector<8x32xf32>, vector<32x4xf32>, vector<8x4xf32> -> vector<8x4xf32>
    %3 = math.tanh %2 : vector<8x4xf32>
    %4 = math.exp %3 : vector<8x4xf32>
    %cst_3 = arith.constant dense<0.000000e+00> : vector<8xf32>
    %5 = vector.multi_reduction <add>, %4, %cst_3 [1] : vector<8x4xf32> to vector<8xf32>
    %6 = vector.shape_cast %5 : vector<8xf32> to vector<8x1xf32>
    %7 = vector.broadcast %6 : vector<8x1xf32> to vector<8x4xf32>
    %8 = arith.divf %4, %7 : vector<8x4xf32>
    %c0_4 = arith.constant 0 : index
    %c0_5 = arith.constant 0 : index
    %9 = vector.load %arg3[%c0_4, %c0_5] : memref<8x4xf32, #tpu.memory_space<vmem>>, vector<8x4xf32>
    tpu.vector_store %arg3[%c0_4, %c0_5], %8 {strides = array<i32>} : memref<8x4xf32, #tpu.memory_space<vmem>>, vector<8x4xf32>,
    return
  }
  func.func @transform_0(%arg0: i32) -> (i32, i32) {
    %c0_i32 = arith.constant 0 : i32
    %c0_i32_0 = arith.constant 0 : i32
    return %arg0, %c0_i32 : i32, i32
  }
  func.func @transform_1(%arg0: i32) -> (i32, i32) {
    %c0_i32 = arith.constant 0 : i32
    %c0_i32_0 = arith.constant 0 : i32
    %c0_i32_1 = arith.constant 0 : i32
    return %c0_i32, %c0_i32_0 : i32, i32
  }
  func.func @transform_2(%arg0: i32) -> (i32, i32) {
    %c0_i32 = arith.constant 0 : i32
    %c0_i32_0 = arith.constant 0 : i32
    return %arg0, %c0_i32 : i32, i32
  }
}

</mosaic_0001>

<llo_original>
// kernel: tpu_custom_call.1
$region0: #{tpu_custom_call.1}
  #allocation0 [shape = 'u32[]', space=smem, size = 0x4, offset = 0x4, fixed_abs, tag = 'smem constant byte address 0x4 - core index']
  #allocation1 [shape = 'u32[72,128]{1,0:T(1,128)}', space=vmem, size = 0x9000, scoped, tag = 'internal scratch']
  %s0 = inlined_call_operand.vmem [shape: f32[8,32], index: 0, kind: input, shape index: {}]
  %s1 = inlined_call_operand.vmem [shape: f32[32,4], index: 1, kind: input, shape index: {}]
  %s2 = inlined_call_operand.vmem [shape: f32[8,4], index: 2, kind: output, shape index: {}]
  %s3 = sld [smem:[#allocation0]]
  $region18: #{tpu_custom_call.1} parent=0
    _
  %s5 = ssub.s32 1, %s3
  %s6 = scalar_select 0, %s5, %s3
  // Predicated region
  $region2: #{tpu_custom_call.1} parent=0 // pred_check
    _
  $region3: #{tpu_custom_call.1} parent=0 // pred_check_branch
    %8 = sbr.rel (0) target = $region5
  $region4: #{tpu_custom_call.1} parent=0 // pred_region
    _
  $region5: #{tpu_custom_call.1} parent=0 // pred_fallthru
    _
  // Predicated region
  $region6: #{tpu_custom_call.1} parent=0 // pred_check
    _
  $region7: #{tpu_custom_call.1} parent=0 // pred_check_branch
    %10 = sbr.rel (0) target = $region9
  $region8: #{tpu_custom_call.1} parent=0 // pred_region
    _
  $region9: #{tpu_custom_call.1} parent=0 // pred_fallthru
    _
  %v11 = vld [vmem:[%s0] sm:$0xff]
  %v12 = vld [vmem:[%s1] sm:$0xff]
  %v13 = vld [vmem:[%s1 + $0x8] sm:$0xff]
  %v14 = vld [vmem:[%s1 + $0x10] sm:$0xff]
  %v15 = vld [vmem:[%s1 + $0x18] sm:$0xff]
  %vm16 = vcmask 261120
  %v18 = vsel %vm16, %v11, 0
  %20 = vmatpush.msra.mxu0 0.0
  %21 = vmatpush.msra.mxu0 0.0
  %22 = vmatpush.msra.mxu0 0.0
  %23 = vmatpush.msra.mxu0 0.0
  %24 = vmatpush.msra.mxu0 0.0
  %25 = vmatpush.msra.mxu0 0.0
  %26 = vmatpush.msra.mxu0 0.0
  %27 = vmatpush.msra.mxu0 0.0
  %28 = vmatpush.msra.mxu0 0.0
  %29 = vmatpush.msra.mxu0 0.0
  %30 = vmatpush.msra.mxu0 0.0
  %31 = vmatpush.msra.mxu0 0.0
  %v32 = vand.u32 %v15, 4294901760
  %33 = vmatpush.msra.mxu0 %v32
  %v34 = vand.u32 %v14, 4294901760
  %35 = vmatpush.msra.mxu0 %v34
  %v36 = vand.u32 %v13, 4294901760
  %37 = vmatpush.msra.mxu0 %v36
  %v38 = vand.u32 %v12, 4294901760
  %39 = vmatpush.msra.mxu0 %v38
  %v40 = vand.u32 %v18, 4294901760
  %v41 = vsub.f32 %v18, %v40
  %v42 = vand.u32 %v41, 4294901760
  %v43 = vsub.f32 %v41, %v42
  %v44 = vand.u32 %v43, 4294901760
  %45 = vmatmul.f32.gmra.mxu0 %v44
  %v46 = vpop.f32.mrf.mxu0
  %v47 = vadd.f32 0.0, %v46
  %48 = vdwg.mxu0
  %49 = vmatpush.msra.mxu0 0.0
  %50 = vmatpush.msra.mxu0 0.0
  %51 = vmatpush.msra.mxu0 0.0
  %52 = vmatpush.msra.mxu0 0.0
  %53 = vmatpush.msra.mxu0 0.0
  %54 = vmatpush.msra.mxu0 0.0
  %55 = vmatpush.msra.mxu0 0.0
  %56 = vmatpush.msra.mxu0 0.0
  %57 = vmatpush.msra.mxu0 0.0
  %58 = vmatpush.msra.mxu0 0.0
  %59 = vmatpush.msra.mxu0 0.0
  %60 = vmatpush.msra.mxu0 0.0
  %v61 = vand.u32 %v15, 4294901760
  %v62 = vsub.f32 %v15, %v61
  %v63 = vand.u32 %v62, 4294901760
  %v64 = vsub.f32 %v62, %v63
  %v65 = vand.u32 %v64, 4294901760
  %66 = vmatpush.msra.mxu0 %v65
  %v67 = vand.u32 %v14, 4294901760
  %v68 = vsub.f32 %v14, %v67
  %v69 = vand.u32 %v68, 4294901760
  %v70 = vsub.f32 %v68, %v69
  %v71 = vand.u32 %v70, 4294901760
  %72 = vmatpush.msra.mxu0 %v71
  %v73 = vand.u32 %v13, 4294901760
  %v74 = vsub.f32 %v13, %v73
  %v75 = vand.u32 %v74, 4294901760
  %v76 = vsub.f32 %v74, %v75
  %v77 = vand.u32 %v76, 4294901760
  %78 = vmatpush.msra.mxu0 %v77
  %v79 = vand.u32 %v12, 4294901760
  %v80 = vsub.f32 %v12, %v79
  %v81 = vand.u32 %v80, 4294901760
  %v82 = vsub.f32 %v80, %v81
  %v83 = vand.u32 %v82, 4294901760
  %84 = vmatpush.msra.mxu0 %v83
  %v85 = vand.u32 %v18, 4294901760
  %86 = vmatmul.f32.gmra.mxu0 %v85
  %v87 = vpop.f32.mrf.mxu0
  %v88 = vadd.f32 %v47, %v87
  %89 = vdwg.mxu0
  %90 = vmatpush.msra.mxu0 0.0
  %91 = vmatpush.msra.mxu0 0.0
  %92 = vmatpush.msra.mxu0 0.0
  %93 = vmatpush.msra.mxu0 0.0
  %94 = vmatpush.msra.mxu0 0.0
  %95 = vmatpush.msra.mxu0 0.0
  %96 = vmatpush.msra.mxu0 0.0
  %97 = vmatpush.msra.mxu0 0.0
  %98 = vmatpush.msra.mxu0 0.0
  %99 = vmatpush.msra.mxu0 0.0
  %100 = vmatpush.msra.mxu0 0.0
  %101 = vmatpush.msra.mxu0 0.0
  %v102 = vand.u32 %v15, 4294901760
  %v103 = vsub.f32 %v15, %v102
  %104 = vmatpush.msra.mxu0 %v103
  %v105 = vand.u32 %v14, 4294901760
  %v106 = vsub.f32 %v14, %v105
  %107 = vmatpush.msra.mxu0 %v106
  %v108 = vand.u32 %v13, 4294901760
  %v109 = vsub.f32 %v13, %v108
  %110 = vmatpush.msra.mxu0 %v109
  %v111 = vand.u32 %v12, 4294901760
  %v112 = vsub.f32 %v12, %v111
  %113 = vmatpush.msra.mxu0 %v112
  %v114 = vand.u32 %v18, 4294901760
  %v115 = vsub.f32 %v18, %v114
  %116 = vmatmul.f32.gmra.mxu0 %v115
  %v117 = vpop.f32.mrf.mxu0
  %v118 = vadd.f32 %v88, %v117
  %119 = vdwg.mxu0
  %120 = vmatpush.msra.mxu0 0.0
  %121 = vmatpush.msra.mxu0 0.0
  %122 = vmatpush.msra.mxu0 0.0
  %123 = vmatpush.msra.mxu0 0.0
  %124 = vmatpush.msra.mxu0 0.0
  %125 = vmatpush.msra.mxu0 0.0
  %126 = vmatpush.msra.mxu0 0.0
  %127 = vmatpush.msra.mxu0 0.0
  %128 = vmatpush.msra.mxu0 0.0
  %129 = vmatpush.msra.mxu0 0.0
  %130 = vmatpush.msra.mxu0 0.0
  %131 = vmatpush.msra.mxu0 0.0
  %v132 = vand.u32 %v15, 4294901760
  %133 = vmatpush.msra.mxu0 %v132
  %v134 = vand.u32 %v14, 4294901760
  %135 = vmatpush.msra.mxu0 %v134
  %v136 = vand.u32 %v13, 4294901760
  %137 = vmatpush.msra.mxu0 %v136
  %v138 = vand.u32 %v12, 4294901760
  %139 = vmatpush.msra.mxu0 %v138
  %v140 = vand.u32 %v18, 4294901760
  %v141 = vsub.f32 %v18, %v140
  %v142 = vand.u32 %v141, 4294901760
  %143 = vmatmul.f32.gmra.mxu0 %v142
  %v144 = vpop.f32.mrf.mxu0
  %v145 = vadd.f32 %v118, %v144
  %146 = vdwg.mxu0
  %147 = vmatpush.msra.mxu0 0.0
  %148 = vmatpush.msra.mxu0 0.0
  %149 = vmatpush.msra.mxu0 0.0
  %150 = vmatpush.msra.mxu0 0.0
  %151 = vmatpush.msra.mxu0 0.0
  %152 = vmatpush.msra.mxu0 0.0
  %153 = vmatpush.msra.mxu0 0.0
  %154 = vmatpush.msra.mxu0 0.0
  %155 = vmatpush.msra.mxu0 0.0
  %156 = vmatpush.msra.mxu0 0.0
  %157 = vmatpush.msra.mxu0 0.0
  %158 = vmatpush.msra.mxu0 0.0
  %v159 = vand.u32 %v15, 4294901760
  %v160 = vsub.f32 %v15, %v159
  %v161 = vand.u32 %v160, 4294901760
  %162 = vmatpush.msra.mxu0 %v161
  %v163 = vand.u32 %v14, 4294901760
  %v164 = vsub.f32 %v14, %v163
  %v165 = vand.u32 %v164, 4294901760
  %166 = vmatpush.msra.mxu0 %v165
  %v167 = vand.u32 %v13, 4294901760
  %v168 = vsub.f32 %v13, %v167
  %v169 = vand.u32 %v168, 4294901760
  %170 = vmatpush.msra.mxu0 %v169
  %v171 = vand.u32 %v12, 4294901760
  %v172 = vsub.f32 %v12, %v171
  %v173 = vand.u32 %v172, 4294901760
  %174 = vmatpush.msra.mxu0 %v173
  %v175 = vand.u32 %v18, 4294901760
  %176 = vmatmul.f32.gmra.mxu0 %v175
  %v177 = vpop.f32.mrf.mxu0
  %v178 = vadd.f32 %v145, %v177
  %179 = vdwg.mxu0
  %180 = vmatpush.msra.mxu0 0.0
  %181 = vmatpush.msra.mxu0 0.0
  %182 = vmatpush.msra.mxu0 0.0
  %183 = vmatpush.msra.mxu0 0.0
  %184 = vmatpush.msra.mxu0 0.0
  %185 = vmatpush.msra.mxu0 0.0
  %186 = vmatpush.msra.mxu0 0.0
  %187 = vmatpush.msra.mxu0 0.0
  %188 = vmatpush.msra.mxu0 0.0
  %189 = vmatpush.msra.mxu0 0.0
  %190 = vmatpush.msra.mxu0 0.0
  %191 = vmatpush.msra.mxu0 0.0
  %v192 = vand.u32 %v15, 4294901760
  %193 = vmatpush.msra.mxu0 %v192
  %v194 = vand.u32 %v14, 4294901760
  %195 = vmatpush.msra.mxu0 %v194
  %v196 = vand.u32 %v13, 4294901760
  %197 = vmatpush.msra.mxu0 %v196
  %v198 = vand.u32 %v12, 4294901760
  %199 = vmatpush.msra.mxu0 %v198
  %v200 = vand.u32 %v18, 4294901760
  %201 = vmatmul.f32.gmra.mxu0 %v200
  %v202 = vpop.f32.mrf.mxu0
  %v203 = vadd.f32 %v178, %v202
  %204 = vdwg.mxu0
  %v205 = vtanh.pop %v203
  %v206 = vmul.f32 %v205, 1.442695
  %v207 = vpow.pop %v206
  %vm208 = vcmask 31744
  %v209 = vsel %vm208, %v207, 0.0
  %210 = vadd.xlane.f32.xlu0 %v209
  %v211 = vpop.xlane.xlu0 %210
  %v212 = vrcp.pop %v211
  %v213 = vmul.f32 %v211, %v212
  %v214 = vsub.f32 1.0, %v213
  %v215 = vmul.f32 %v212, %v214
  %v216 = vadd.f32 %v212, %v215
  %vm217 = vweird.f32 %v211
  %vm218 = vweird.f32 %v212
  %vm219 = vmor %vm217, %vm218
  %v220 = vsel %vm219, %v212, %v216
  %v221 = vand.u32 2147483647, %v211
  %vm222 = vcmp.eq.f32.partialorder %v221, 8.507059e+37
  %v223 = vand.u32 %v211, 2147483648
  %v224 = vor.u32 1.1754944e-38, %v223
  %v225 = vsel %vm222, %v224, %v220
  %v226 = vmul.f32 %v207, %v225
  %227 = vst.msk [vmem:[%s2] sm:$0xff] %vm208, %v226
  // Predicated region
  $region10: #{tpu_custom_call.1} parent=0 // pred_check
    _
  $region11: #{tpu_custom_call.1} parent=0 // pred_check_branch
    %229 = sbr.rel (0) target = $region13
  $region12: #{tpu_custom_call.1} parent=0 // pred_region
    _
  $region13: #{tpu_custom_call.1} parent=0 // pred_fallthru
    _
  // Predicated region
  $region14: #{tpu_custom_call.1} parent=0 // pred_check
    _
  $region15: #{tpu_custom_call.1} parent=0 // pred_check_branch
    %231 = sbr.rel (0) target = $region17
  $region16: #{tpu_custom_call.1} parent=0 // pred_region
    _
  $region17: #{tpu_custom_call.1} parent=0 // pred_fallthru
    _

</llo_original>
